<compile_context>
chip_gen: v6e
topology: v6e:2x2x1
jax: 0.10.0
libtpu: 0.0.40
codegen_flags: <defaults>
</compile_context>

<pallas_src>
import jax
import jax.numpy as jnp
from jax.experimental import pallas as pl
from jax.experimental.pallas import tpu as pltpu

IN_DIM = 4       # fc1 input features
HID_DIM = 10     # fc1 output features
OUT_DIM = 3      # fc2 output features
HID_PAD = 16     # hidden features padded to a sublane-friendly width
OUT_PAD = 8      # output features padded to 8 lanes (narrow store, sliced later)
TB_MAX = 2048    # max batch-tile rows (amortizes per-grid-step overhead)


def mlp_kernel(x_ref, w1_ref, b1_ref, w2_ref, b2_ref, o_ref):
    # x_ref: [TB, 4]      w1_ref: [4, HID_PAD]    b1_ref: [1, HID_PAD]
    # w2_ref: [HID_PAD, OUT_PAD]  b2_ref: [1, OUT_PAD]   o_ref: [TB, OUT_PAD]
    x = x_ref[...]
    h = jnp.dot(x, w1_ref[...],
                preferred_element_type=jnp.float32)       # [TB, HID_PAD]
    h = jnp.maximum(h + b1_ref[...], 0.0)                 # ReLU (padded cols stay 0)
    y = jnp.dot(h, w2_ref[...],
                preferred_element_type=jnp.float32)       # [TB, OUT_PAD]
    o_ref[...] = (y + b2_ref[...]).astype(o_ref.dtype)    # narrow (8-lane) store


def _round_up(n: int, m: int) -> int:
    return ((n + m - 1) // m) * m


def _cdiv(a: int, b: int) -> int:
    return -(-a // b)


def _choose_tb(batch: int) -> int:
    """Pick a batch tile: big enough to amortize per-step overhead, >=2 grid
    steps when the batch is large enough (v7x dual-TensorCore), and with
    padding waste bounded by a few sublane groups."""
    n_tiles = max(1, _cdiv(batch, TB_MAX))
    if batch >= 256:
        n_tiles = max(n_tiles, 2)
    return _round_up(_cdiv(batch, n_tiles), 8)


def pad_params(w1, b1, w2, b2):
    """Pad parameters to aligned shapes ONCE (outside the hot path).

    Padded rows/cols are exactly zero, so ReLU and the second matmul are
    unchanged and output columns 3..7 are exactly zero.
    """
    w1p = jnp.zeros((IN_DIM, HID_PAD), jnp.float32).at[:, :HID_DIM].set(w1)
    b1p = jnp.zeros((1, HID_PAD), jnp.float32).at[0, :HID_DIM].set(b1)
    w2p = jnp.zeros((HID_PAD, OUT_PAD), jnp.float32).at[:HID_DIM, :OUT_DIM].set(w2)
    b2p = jnp.zeros((1, OUT_PAD), jnp.float32).at[0, :OUT_DIM].set(b2)
    return w1p, b1p, w2p, b2p


def net_forward(x, padded_params):
    """Pallas path. x: [B, 4] f32; padded_params from pad_params(). -> [B, 3] f32."""
    w1p, b1p, w2p, b2p = padded_params
    B = x.shape[0]

    TB = _choose_tb(B)
    Bp = _round_up(B, TB)
    if Bp != B:
        # Padded rows compute relu(b1) @ w2 + b2 (garbage), sliced off below.
        x = jnp.pad(x, ((0, Bp - B), (0, 0)))

    out_padded = pl.pallas_call(
        mlp_kernel,
        out_shape=jax.ShapeDtypeStruct((Bp, OUT_PAD), jnp.float32),
        grid_spec=pltpu.PrefetchScalarGridSpec(
            num_scalar_prefetch=0,
            grid=(Bp // TB,),
            in_specs=[
                pl.BlockSpec((TB, IN_DIM), lambda i: (i, 0)),        # x tile
                pl.BlockSpec((IN_DIM, HID_PAD), lambda i: (0, 0)),   # w1 (resident)
                pl.BlockSpec((1, HID_PAD), lambda i: (0, 0)),        # b1 (resident)
                pl.BlockSpec((HID_PAD, OUT_PAD), lambda i: (0, 0)),  # w2 (resident)
                pl.BlockSpec((1, OUT_PAD), lambda i: (0, 0)),        # b2 (resident)
            ],
            out_specs=pl.BlockSpec((TB, OUT_PAD), lambda i: (i, 0)),
        ),
        compiler_params=pltpu.CompilerParams(
            dimension_semantics=("parallel",)),
    )(x, w1p, b1p, w2p, b2p)

    return out_padded[:B, :OUT_DIM]


def net_forward_xla(x, params):
    """Plain-XLA fallback (use for tiny batches where launch overhead dominates)."""
    w1, b1, w2, b2 = params
    return jnp.maximum(x @ w1 + b1, 0.0) @ w2 + b2


def init_params(key):
    # Deterministic init mirroring torch.nn.Linear's default
    # U(-1/sqrt(fan_in), 1/sqrt(fan_in)); weights stored as [in, out].
    k1, k2, k3, k4 = jax.random.split(key, 4)
    bound1 = 1.0 / jnp.sqrt(float(IN_DIM))
    bound2 = 1.0 / jnp.sqrt(float(HID_DIM))
    w1 = jax.random.uniform(k1, (IN_DIM, HID_DIM), jnp.float32, -bound1, bound1)
    b1 = jax.random.uniform(k2, (HID_DIM,), jnp.float32, -bound1, bound1)
    w2 = jax.random.uniform(k3, (HID_DIM, OUT_DIM), jnp.float32, -bound2, bound2)
    b2 = jax.random.uniform(k4, (OUT_DIM,), jnp.float32, -bound2, bound2)
    return w1, b1, w2, b2


if __name__ == "__main__":
    key = jax.random.PRNGKey(0)
    k_x, k_p = jax.random.split(key)

    B = 8
    x = jax.random.normal(k_x, (B, IN_DIM), dtype=jnp.float32)
    w1, b1, w2, b2 = init_params(k_p)

    # Pad parameters once, outside the per-call hot path.
    padded = pad_params(w1, b1, w2, b2)

    out = net_forward(x, padded)
    out = jax.block_until_ready(out)

    # Sanity check against pure-JAX reference of the original Net forward.
    ref = net_forward_xla(x, (w1, b1, w2, b2))
    assert out.shape == (B, OUT_DIM)
    assert jnp.allclose(out, ref, atol=1e-5, rtol=1e-5)

    print("KERNEL_OK")
</pallas_src>

<mosaic_0001>
module attributes {stable_mosaic.version = 11 : i64} {
  func.func @mlp_kernel(%arg0: i32, %arg1: memref<8x4xf32, #tpu.memory_space<vmem>>, %arg2: memref<4x16xf32, #tpu.memory_space<vmem>>, %arg3: memref<1x16xf32, #tpu.memory_space<vmem>>, %arg4: memref<16x8xf32, #tpu.memory_space<vmem>>, %arg5: memref<1x8xf32, #tpu.memory_space<vmem>>, %arg6: memref<8x8xf32, #tpu.memory_space<vmem>>) attributes {dimension_semantics = [#tpu.dimension_semantics<parallel>], iteration_bounds = array<i64: 1>, scalar_prefetch = 0 : i64, scratch_operands = 0 : i64, tpu.core_type = #tpu.core_type<tc>, window_params = [{transform_indices = @transform_0, window_bounds = array<i64: 8, 4>}, {pipeline_mode = #tpu.pipeline_mode<synchronous>, transform_indices = @transform_1, window_bounds = array<i64: 4, 16>}, {pipeline_mode = #tpu.pipeline_mode<synchronous>, transform_indices = @transform_2, window_bounds = array<i64: 1, 16>}, {pipeline_mode = #tpu.pipeline_mode<synchronous>, transform_indices = @transform_3, window_bounds = array<i64: 16, 8>}, {pipeline_mode = #tpu.pipeline_mode<synchronous>, transform_indices = @transform_4, window_bounds = array<i64: 1, 8>}, {transform_indices = @transform_5, window_bounds = array<i64: 8, 8>}]} {
    %c0 = arith.constant 0 : index
    %c0_0 = arith.constant 0 : index
    %0 = vector.load %arg1[%c0, %c0_0] : memref<8x4xf32, #tpu.memory_space<vmem>>, vector<8x4xf32>
    %c0_1 = arith.constant 0 : index
    %c0_2 = arith.constant 0 : index
    %1 = vector.load %arg2[%c0_1, %c0_2] : memref<4x16xf32, #tpu.memory_space<vmem>>, vector<4x16xf32>
    %cst = arith.constant dense<0.000000e+00> : vector<8x16xf32>
    %2 = tpu.matmul %0, %1, %cst {dimension_numbers = #tpu.dot_dimension_numbers<[1], [0], [0], [1], [0, 0, 1, 1], [], []>} : vector<8x4xf32>, vector<4x16xf32>, vector<8x16xf32> -> vector<8x16xf32>
    %c0_3 = arith.constant 0 : index
    %c0_4 = arith.constant 0 : index
    %3 = vector.load %arg3[%c0_3, %c0_4] : memref<1x16xf32, #tpu.memory_space<vmem>>, vector<1x16xf32>
    %4 = vector.broadcast %3 : vector<1x16xf32> to vector<8x16xf32>
    %5 = arith.addf %2, %4 : vector<8x16xf32>
    %cst_5 = arith.constant 0.000000e+00 : f32
    %6 = vector.broadcast %cst_5 : f32 to vector<8x16xf32>
    %7 = arith.maximumf %5, %6 : vector<8x16xf32>
    %c0_6 = arith.constant 0 : index
    %c0_7 = arith.constant 0 : index
    %8 = vector.load %arg4[%c0_6, %c0_7] : memref<16x8xf32, #tpu.memory_space<vmem>>, vector<16x8xf32>
    %cst_8 = arith.constant dense<0.000000e+00> : vector<8x8xf32>
    %9 = tpu.matmul %7, %8, %cst_8 {dimension_numbers = #tpu.dot_dimension_numbers<[1], [0], [0], [1], [0, 0, 1, 1], [], []>} : vector<8x16xf32>, vector<16x8xf32>, vector<8x8xf32> -> vector<8x8xf32>
    %c0_9 = arith.constant 0 : index
    %c0_10 = arith.constant 0 : index
    %10 = vector.load %arg5[%c0_9, %c0_10] : memref<1x8xf32, #tpu.memory_space<vmem>>, vector<1x8xf32>
    %11 = vector.broadcast %10 : vector<1x8xf32> to vector<8x8xf32>
    %12 = arith.addf %9, %11 : vector<8x8xf32>
    %c0_11 = arith.constant 0 : index
    %c0_12 = arith.constant 0 : index
    %13 = vector.load %arg6[%c0_11, %c0_12] : memref<8x8xf32, #tpu.memory_space<vmem>>, vector<8x8xf32>
    tpu.vector_store %arg6[%c0_11, %c0_12], %12 {strides = array<i32>} : memref<8x8xf32, #tpu.memory_space<vmem>>, vector<8x8xf32>,
    return
  }
  func.func @transform_0(%arg0: i32) -> (i32, i32) {
    %c0_i32 = arith.constant 0 : i32
    %c0_i32_0 = arith.constant 0 : i32
    return %arg0, %c0_i32 : i32, i32
  }
  func.func @transform_1(%arg0: i32) -> (i32, i32) {
    %c0_i32 = arith.constant 0 : i32
    %c0_i32_0 = arith.constant 0 : i32
    %c0_i32_1 = arith.constant 0 : i32
    return %c0_i32, %c0_i32_0 : i32, i32
  }
  func.func @transform_2(%arg0: i32) -> (i32, i32) {
    %c0_i32 = arith.constant 0 : i32
    %c0_i32_0 = arith.constant 0 : i32
    %c0_i32_1 = arith.constant 0 : i32
    return %c0_i32, %c0_i32_0 : i32, i32
  }
  func.func @transform_3(%arg0: i32) -> (i32, i32) {
    %c0_i32 = arith.constant 0 : i32
    %c0_i32_0 = arith.constant 0 : i32
    %c0_i32_1 = arith.constant 0 : i32
    return %c0_i32, %c0_i32_0 : i32, i32
  }
  func.func @transform_4(%arg0: i32) -> (i32, i32) {
    %c0_i32 = arith.constant 0 : i32
    %c0_i32_0 = arith.constant 0 : i32
    %c0_i32_1 = arith.constant 0 : i32
    return %c0_i32, %c0_i32_0 : i32, i32
  }
  func.func @transform_5(%arg0: i32) -> (i32, i32) {
    %c0_i32 = arith.constant 0 : i32
    %c0_i32_0 = arith.constant 0 : i32
    return %arg0, %c0_i32 : i32, i32
  }
}

</mosaic_0001>

<llo_original>
// kernel: tpu_custom_call.1
$region0: #{tpu_custom_call.1}
  #allocation0 [shape = 'u32[]', space=smem, size = 0x4, offset = 0x4, fixed_abs, tag = 'smem constant byte address 0x4 - core index']
  #allocation1 [shape = 'u32[144,128]{1,0:T(1,128)}', space=vmem, size = 0x12000, scoped, tag = 'internal scratch']
  %s0 = inlined_call_operand.vmem [shape: f32[8,4], index: 0, kind: input, shape index: {}]
  %s1 = inlined_call_operand.vmem [shape: f32[4,16], index: 1, kind: input, shape index: {}]
  %s2 = inlined_call_operand.vmem [shape: f32[1,16], index: 2, kind: input, shape index: {}]
  %s3 = inlined_call_operand.vmem [shape: f32[16,8], index: 3, kind: input, shape index: {}]
  %s4 = inlined_call_operand.vmem [shape: f32[1,8], index: 4, kind: input, shape index: {}]
  %s5 = inlined_call_operand.hbm [shape: f32[8,8], index: 5, kind: output, shape index: {}]
  %s6 = sld [smem:[#allocation0]]
  $region30: #{tpu_custom_call.1} parent=0
    _
  %s8 = ssub.s32 1, %s6
  %s9 = scalar_select 0, %s8, %s6
  $region1: #{tpu_custom_call.1} parent=0
    #allocation2 [shape = 'u8[4096]{0}', space=vmem, size = 0x1000, scoped, tag = 'output window, operand 0, single buffered']
    #allocation3 [shape = 's32[1]{0}', space=sflag, size = 0x4, scoped, tag = 'scoped memory for tpu_custom_call.1']
    %10 = vsyncpa [#allocation3], 0
    // Predicated region
    $region2: #{tpu_custom_call.1} parent=1 // pred_check
      _
    $region3: #{tpu_custom_call.1} parent=1 // pred_check_branch
      %12 = sbr.rel (0) target = $region5
    $region4: #{tpu_custom_call.1} parent=1 // pred_region
      _
    $region5: #{tpu_custom_call.1} parent=1 // pred_fallthru
      _
    // Predicated region
    $region6: #{tpu_custom_call.1} parent=1 // pred_check
      _
    $region7: #{tpu_custom_call.1} parent=1 // pred_check_branch
      %14 = sbr.rel (0) target = $region9
    $region8: #{tpu_custom_call.1} parent=1 // pred_region
      _
    $region9: #{tpu_custom_call.1} parent=1 // pred_fallthru
      _
    // Predicated region
    $region10: #{tpu_custom_call.1} parent=1 // pred_check
      _
    $region11: #{tpu_custom_call.1} parent=1 // pred_check_branch
      %16 = sbr.rel (0) target = $region13
    $region12: #{tpu_custom_call.1} parent=1 // pred_region
      _
    $region13: #{tpu_custom_call.1} parent=1 // pred_fallthru
      _
    // Predicated region
    $region14: #{tpu_custom_call.1} parent=1 // pred_check
      _
    $region15: #{tpu_custom_call.1} parent=1 // pred_check_branch
      %18 = sbr.rel (0) target = $region17
    $region16: #{tpu_custom_call.1} parent=1 // pred_region
      _
    $region17: #{tpu_custom_call.1} parent=1 // pred_fallthru
      _
    // Predicated region
    $region18: #{tpu_custom_call.1} parent=1 // pred_check
      _
    $region19: #{tpu_custom_call.1} parent=1 // pred_check_branch
      %20 = sbr.rel (0) target = $region21
    $region20: #{tpu_custom_call.1} parent=1 // pred_region
      _
    $region21: #{tpu_custom_call.1} parent=1 // pred_fallthru
      _
    %v21 = vld [vmem:[%s0] sm:$0xff]
    %v22 = vld [vmem:[%s1] sm:$0xf]
    %v23 = vld [vmem:[%s2] sm:$0x1]
    %v25 = vlaneseq
    %v26 = vshrl.u32 %v25, 7
    %v27 = vsub.s32 0, %v26
    %v28 = vrot.slane %v23, %v27
    %vm30 = vcmask 31744
    %v32 = vsel %vm30, %v21, 0
    %vm34 = vcmask 1043456
    %v36 = vsel %vm34, %v22, 0
    %38 = vmatprep.subr.mxu0 0.0
    %39 = vmatpush1.msra.mxu0 0.0
    %40 = vmatprep.subr.mxu0 0.0
    %41 = vmatpush1.msra.mxu0 0.0
    %42 = vmatprep.subr.mxu0 0.0
    %43 = vmatpush1.msra.mxu0 0.0
    %44 = vmatprep.subr.mxu0 0.0
    %45 = vmatpush1.msra.mxu0 0.0
    %46 = vmatprep.subr.mxu0 0.0
    %47 = vmatpush1.msra.mxu0 0.0
    %48 = vmatprep.subr.mxu0 0.0
    %49 = vmatpush1.msra.mxu0 0.0
    %50 = vmatprep.subr.mxu0 0.0
    %51 = vmatpush1.msra.mxu0 0.0
    %52 = vmatprep.subr.mxu0 0.0
    %53 = vmatpush1.msra.mxu0 0.0
    %54 = vmatprep.subr.mxu0 0.0
    %55 = vmatpush1.msra.mxu0 0.0
    %56 = vmatprep.subr.mxu0 0.0
    %57 = vmatpush1.msra.mxu0 0.0
    %58 = vmatprep.subr.mxu0 0.0
    %59 = vmatpush1.msra.mxu0 0.0
    %60 = vmatprep.subr.mxu0 0.0
    %61 = vmatpush1.msra.mxu0 0.0
    %62 = vmatprep.subr.mxu0 0.0
    %63 = vmatpush1.msra.mxu0 0.0
    %64 = vmatprep.subr.mxu0 0.0
    %65 = vmatpush1.msra.mxu0 0.0
    %66 = vmatprep.subr.mxu0 0.0
    %67 = vmatpush1.msra.mxu0 0.0
    %68 = vmatprep.subr.mxu0 0.0
    %69 = vmatpush1.msra.mxu0 %v36
    %70 = vmatprep.subr.mxu0 0.0
    %71 = vmatpush2.msra.mxu0 0.0
    %72 = vmatprep.subr.mxu0 0.0
    %73 = vmatpush2.msra.mxu0 0.0
    %74 = vmatprep.subr.mxu0 0.0
    %75 = vmatpush2.msra.mxu0 0.0
    %76 = vmatprep.subr.mxu0 0.0
    %77 = vmatpush2.msra.mxu0 0.0
    %78 = vmatprep.subr.mxu0 0.0
    %79 = vmatpush2.msra.mxu0 0.0
    %80 = vmatprep.subr.mxu0 0.0
    %81 = vmatpush2.msra.mxu0 0.0
    %82 = vmatprep.subr.mxu0 0.0
    %83 = vmatpush2.msra.mxu0 0.0
    %84 = vmatprep.subr.mxu0 0.0
    %85 = vmatpush2.msra.mxu0 0.0
    %86 = vmatprep.subr.mxu0 0.0
    %87 = vmatpush2.msra.mxu0 0.0
    %88 = vmatprep.subr.mxu0 0.0
    %89 = vmatpush2.msra.mxu0 0.0
    %90 = vmatprep.subr.mxu0 0.0
    %91 = vmatpush2.msra.mxu0 0.0
    %92 = vmatprep.subr.mxu0 0.0
    %93 = vmatpush2.msra.mxu0 0.0
    %94 = vmatprep.subr.mxu0 0.0
    %95 = vmatpush2.msra.mxu0 0.0
    %96 = vmatprep.subr.mxu0 0.0
    %97 = vmatpush2.msra.mxu0 0.0
    %98 = vmatprep.subr.mxu0 0.0
    %99 = vmatpush2.msra.mxu0 0.0
    %100 = vmatprep.subr.mxu0 0.0
    %101 = vmatpush2.msra.mxu0 0.0
    %102 = vmatprep.mubr.f32.mxu0 0.0
    %103 = vmatmul.mubr.f32.gmra.mxu0 %v32
    %v104 = vpop.f32.mrf.mxu0
    %v105 = vadd.f32 %v28, %v104
    %v106 = vpop.f32.mrf.mxu0
    %107 = vdwg.mxu0
    %v108 = vmax.f32 %v105, 0.0
    %v109 = vld [vmem:[%s3] sm:$0xff]
    %v110 = vld [vmem:[%s3 + $0x8] sm:$0xff]
    %v111 = vld [vmem:[%s4] sm:$0x1]
    %v113 = vlaneseq
    %v114 = vshrl.u32 %v113, 7
    %v115 = vsub.s32 0, %v114
    %v116 = vrot.slane %v111, %v115
    %vm118 = vcmask 130048
    %v120 = vsel %vm118, %v108, 0
    %122 = vmatprep.subr.mxu0 0.0
    %123 = vmatpush1.msra.mxu0 0.0
    %124 = vmatprep.subr.mxu0 0.0
    %125 = vmatpush1.msra.mxu0 0.0
    %126 = vmatprep.subr.mxu0 0.0
    %127 = vmatpush1.msra.mxu0 0.0
    %128 = vmatprep.subr.mxu0 0.0
    %129 = vmatpush1.msra.mxu0 0.0
    %130 = vmatprep.subr.mxu0 0.0
    %131 = vmatpush1.msra.mxu0 0.0
    %132 = vmatprep.subr.mxu0 0.0
    %133 = vmatpush1.msra.mxu0 0.0
    %134 = vmatprep.subr.mxu0 0.0
    %135 = vmatpush1.msra.mxu0 0.0
    %136 = vmatprep.subr.mxu0 0.0
    %137 = vmatpush1.msra.mxu0 0.0
    %138 = vmatprep.subr.mxu0 0.0
    %139 = vmatpush1.msra.mxu0 0.0
    %140 = vmatprep.subr.mxu0 0.0
    %141 = vmatpush1.msra.mxu0 0.0
    %142 = vmatprep.subr.mxu0 0.0
    %143 = vmatpush1.msra.mxu0 0.0
    %144 = vmatprep.subr.mxu0 0.0
    %145 = vmatpush1.msra.mxu0 0.0
    %146 = vmatprep.subr.mxu0 0.0
    %147 = vmatpush1.msra.mxu0 0.0
    %148 = vmatprep.subr.mxu0 0.0
    %149 = vmatpush1.msra.mxu0 0.0
    %150 = vmatprep.subr.mxu0 0.0
    %151 = vmatpush1.msra.mxu0 %v110
    %152 = vmatprep.subr.mxu0 0.0
    %153 = vmatpush1.msra.mxu0 %v109
    %154 = vmatprep.subr.mxu0 0.0
    %155 = vmatpush2.msra.mxu0 0.0
    %156 = vmatprep.subr.mxu0 0.0
    %157 = vmatpush2.msra.mxu0 0.0
    %158 = vmatprep.subr.mxu0 0.0
    %159 = vmatpush2.msra.mxu0 0.0
    %160 = vmatprep.subr.mxu0 0.0
    %161 = vmatpush2.msra.mxu0 0.0
    %162 = vmatprep.subr.mxu0 0.0
    %163 = vmatpush2.msra.mxu0 0.0
    %164 = vmatprep.subr.mxu0 0.0
    %165 = vmatpush2.msra.mxu0 0.0
    %166 = vmatprep.subr.mxu0 0.0
    %167 = vmatpush2.msra.mxu0 0.0
    %168 = vmatprep.subr.mxu0 0.0
    %169 = vmatpush2.msra.mxu0 0.0
    %170 = vmatprep.subr.mxu0 0.0
    %171 = vmatpush2.msra.mxu0 0.0
    %172 = vmatprep.subr.mxu0 0.0
    %173 = vmatpush2.msra.mxu0 0.0
    %174 = vmatprep.subr.mxu0 0.0
    %175 = vmatpush2.msra.mxu0 0.0
    %176 = vmatprep.subr.mxu0 0.0
    %177 = vmatpush2.msra.mxu0 0.0
    %178 = vmatprep.subr.mxu0 0.0
    %179 = vmatpush2.msra.mxu0 0.0
    %180 = vmatprep.subr.mxu0 0.0
    %181 = vmatpush2.msra.mxu0 0.0
    %182 = vmatprep.subr.mxu0 0.0
    %183 = vmatpush2.msra.mxu0 0.0
    %184 = vmatprep.subr.mxu0 0.0
    %185 = vmatpush2.msra.mxu0 0.0
    %186 = vmatprep.mubr.f32.mxu0 0.0
    %187 = vmatmul.mubr.f32.gmra.mxu0 %v120
    %v188 = vpop.f32.mrf.mxu0
    %v189 = vadd.f32 %v116, %v188
    %v190 = vpop.f32.mrf.mxu0
    %191 = vdwg.mxu0
    %vm192 = vcmask 64512
    %193 = vst.msk [vmem:[#allocation2] sm:$0xff] %vm192, %v189
    // Predicated region
    $region22: #{tpu_custom_call.1} parent=1 // pred_check
      _
    $region23: #{tpu_custom_call.1} parent=1 // pred_check_branch
      %195 = sbr.rel (0) target = $region25
    $region24: #{tpu_custom_call.1} parent=1 // pred_region
      %s197 = ssub.s32 128, 128
      %198 = vsyncadd [#allocation3], %s197
      %s200 = sshll.u32 [#allocation2], 4
      %s201 = int_to_ptr.vmem [resolvable:$true] %s200
      %203 = dma.vmem_to_hbm [thread:$0]  %s201, 128, %s5, [#allocation3]
    $region25: #{tpu_custom_call.1} parent=1 // pred_fallthru
      _
    // Predicated region
    $region26: #{tpu_custom_call.1} parent=1 // pred_check
      _
    $region27: #{tpu_custom_call.1} parent=1 // pred_check_branch
      %205 = sbr.rel (0) target = $region29
    $region28: #{tpu_custom_call.1} parent=1 // pred_region
      %206 = dma.done [#allocation3], 128
    $region29: #{tpu_custom_call.1} parent=1 // pred_fallthru
      _
    %207 = vsyncpa [#allocation3], 1

</llo_original>
